<compile_context>
chip_gen: v5e
topology: v5e:2x2
jax: 0.10.0
libtpu: 0.0.40
codegen_flags: <defaults>
</compile_context>

<pallas_src>
import jax
import jax.numpy as jnp
import numpy as np
from jax.experimental import pallas as pl
from jax.experimental.pallas import tpu as pltpu


# ---------------------------------------------------------------------------
# Fixed linear operators (the module has no trainable parameters).
# ---------------------------------------------------------------------------
def _smooth_matrix(n: int) -> np.ndarray:
    """ReplicationPad(1) + [1,2,1]/4 smoothing along one axis as an (n, n) operator."""
    a = np.zeros((n, n), dtype=np.float64)
    for i in range(n):
        for d, wgt in ((-1, 0.25), (0, 0.5), (1, 0.25)):
            j = min(max(i + d, 0), n - 1)
            a[i, j] += wgt
    return a


def _upsample_matrix(n: int) -> np.ndarray:
    """Bilinear x2 upsample, align_corners=False (half-pixel, clamped) as a (2n, n) operator."""
    u = np.zeros((2 * n, n), dtype=np.float64)
    for i in range(2 * n):
        s = max((i + 0.5) * 0.5 - 0.5, 0.0)
        i0 = min(int(np.floor(s)), n - 1)
        i1 = min(i0 + 1, n - 1)
        lam = s - i0
        u[i, i0] += 1.0 - lam
        u[i, i1] += lam
    return u


# ---------------------------------------------------------------------------
# Generation-aware planning helpers.
# ---------------------------------------------------------------------------
def _tpu_params():
    """Best-effort (num_tensorcores, vmem_capacity_bytes, mxu_m) with safe defaults."""
    vmem_cap = 64 * 1024 * 1024      # v7x physical VMEM — the smallest of recent gens
    num_cores = 1
    mxu_m = 256
    try:
        info = pltpu.get_tpu_info()
        vmem_cap = int(getattr(info, "vmem_capacity_bytes", vmem_cap))
        for attr in ("num_cores", "core_count", "tensorcore_count", "num_tensorcores"):
            v = getattr(info, attr, None)
            if v:
                num_cores = max(num_cores, int(v))
                break
    except Exception:
        pass
    try:
        kind = jax.devices()[0].device_kind.lower().replace(" ", "")
        if "v7" in kind or "tpu7" in kind:
            num_cores = max(num_cores, 2)            # v7x: 2 TensorCores per chip
        if any(t in kind for t in ("v2", "v3", "v4", "v5")):
            mxu_m = 128                               # 128-wide MXU generations
    except Exception:
        pass
    return num_cores, vmem_cap, mxu_m


def _vmem_limit(need_bytes: int, vmem_cap: int) -> int:
    """Scoped-VMEM limit: headroom over the working set, well inside physical VMEM."""
    return int(min(max(32 * 1024 * 1024, 2 * need_bytes), (vmem_cap * 3) // 4))


def _pick_planes_per_step(nc, num_cores, vmem_budget, block_bytes, good_enough):
    """Planes per grid step: must divide N*C and fit the VMEM budget.  Returns the smallest
    count that `good_enough` deems efficient (MXU fill / DMA size), else the largest
    feasible; multi-TensorCore chips keep >= num_cores grid steps when possible."""
    feasible = []
    for bp in range(1, nc + 1):
        if nc % bp:
            continue
        if block_bytes(bp) > vmem_budget:
            continue
        steps = nc // bp
        if num_cores > 1 and 1 < steps < num_cores:
            continue                                  # don't leave a TensorCore idle
        feasible.append(bp)
    if not feasible:
        # TODO(synk): a single plane exceeds the VMEM budget; needs halo-tiled H blocking.
        return 1
    for bp in feasible:
        if good_enough(bp) and (num_cores <= 1 or nc // bp >= num_cores):
            return bp
    if num_cores > 1:
        multi = [bp for bp in feasible if nc // bp >= num_cores]
        if multi:
            return multi[-1]
    return feasible[-1]


# ---------------------------------------------------------------------------
# Kernels.
# ---------------------------------------------------------------------------
def _lane_dense_kernel(x_ref, l_ref, rbd_ref, o_ref):
    # x_ref:   (H, GP*W)       GP planes side by side along the lane axis
    # l_ref:   (THO, H)        row-chunk of the H-side operator L
    # rbd_ref: (GP*W, GP*Wo)   kron(I_GP, R): block-diagonal W-side operator (broadcast)
    # o_ref:   (THO, GP*Wo)    lane-dense output block
    t = jnp.dot(l_ref[...], x_ref[...], preferred_element_type=jnp.float32)
    # NOTE: for bf16 inputs this rounds the intermediate to bf16 between the two MXU
    # matmuls (bf16 MXU rate); f32 inputs stay f32 end to end.
    t = t.astype(rbd_ref.dtype)
    o_ref[...] = jnp.dot(t, rbd_ref[...],
                         preferred_element_type=jnp.float32).astype(o_ref.dtype)


def _make_row_stacked_kernel(bp, h, ho, use_kron):
    def kernel(x_ref, l_ref, r_ref, o_ref):
        # x_ref: (BP*H, W)   BP planes stacked along rows
        # l_ref: (BP*Ho, BP*H) if use_kron else (Ho, H)   (broadcast)
        # r_ref: (W, Wo)                                  (broadcast)
        # o_ref: (BP*Ho, Wo)
        t = jnp.dot(x_ref[...], r_ref[...], preferred_element_type=jnp.float32)
        t = t.astype(r_ref.dtype)
        if use_kron:
            # Small Ho: one matmul with M = BP*Ho keeps the MXU rows filled.
            o_ref[...] = jnp.dot(l_ref[...], t,
                                 preferred_element_type=jnp.float32).astype(o_ref.dtype)
        else:
            # Ho already fills the MXU: per-plane dots, no BPx flop inflation.
            l = l_ref[...]
            for p in range(bp):                                   # static unroll
                o_ref[p * ho:(p + 1) * ho, :] = jnp.dot(
                    l, t[p * h:(p + 1) * h, :],
                    preferred_element_type=jnp.float32).astype(o_ref.dtype)
    return kernel


def _make_per_plane_kernel(bp):
    def kernel(x_ref, l_ref, r_ref, o_ref):
        # x_ref: (BP, H, W), l_ref: (Ho, H), r_ref: (W, Wo), o_ref: (BP, Ho, Wo)
        l = l_ref[...]
        r = r_ref[...]
        for p in range(bp):                                       # static unroll
            t = jnp.dot(x_ref[p], r, preferred_element_type=jnp.float32).astype(r.dtype)
            o_ref[p] = jnp.dot(l, t, preferred_element_type=jnp.float32).astype(o_ref.dtype)
    return kernel


# ---------------------------------------------------------------------------
# Path planners / runners.
# ---------------------------------------------------------------------------
def _plan_lane_dense(nc, h, w, itemsize, op_itemsize, num_cores, vmem_budget):
    """Plan for the lane-dense layout; returns (gp, n_groups, tho, n_row) or None."""
    ho, wo = 2 * h, 2 * w

    def step_bytes(gp):
        blocks = 2 * (h * gp * w + ho * gp * wo) * itemsize       # double-buffered in/out
        ops = (ho * h + (gp * w) * (gp * wo)) * op_itemsize       # broadcast L and kron(I, R)
        return blocks + ops

    gp = None
    for g in range(1, nc + 1):
        if nc % g:
            continue
        lanes = g * w
        if g != nc and lanes % 128:
            continue                      # block lane width must be 128-aligned (or full)
        if lanes > 1024:
            continue                      # bound kron(I_g, R) size / W-side flop inflation
        if step_bytes(g) > vmem_budget:
            continue
        groups = nc // g
        if num_cores > 1 and 1 < groups < num_cores:
            continue
        gp = g                            # keep the largest feasible (densest lanes)
    if gp is None:
        return None
    n_groups = nc // gp
    # Single plane-group on a multi-TensorCore chip: split output rows so both TCs work.
    n_row, tho = 1, ho
    if num_cores > 1 and n_groups < num_cores:
        for cand in (num_cores, 2):
            if cand > 1 and ho % cand == 0 and (ho // cand) % 8 == 0:
                n_row, tho = cand, ho // cand
                break
    return gp, n_groups, tho, n_row


def _run_lane_dense(x, l_h, r_np, op_dtype, plan, vmem_cap):
    n, c, h, w = x.shape
    ho, wo = 2 * h, 2 * w
    nc = n * c
    gp, n_groups, tho, n_row = plan
    itemsize = x.dtype.itemsize
    op_itemsize = jnp.dtype(op_dtype).itemsize

    # Planes on the lane axis: (N, C, H, W) -> (H, N*C*W).  Pure layout plumbing.
    x2 = jnp.transpose(x, (2, 0, 1, 3)).reshape(h, nc * w)
    l_op = jnp.asarray(l_h, dtype=op_dtype)                            # (Ho, H)
    rbd = jnp.asarray(np.kron(np.eye(gp), r_np), dtype=op_dtype)       # (gp*W, gp*Wo)

    flops = 2 * ho * h * nc * w + 2 * n_groups * ho * (gp * w) * (gp * wo)
    bytes_accessed = (x.size + nc * ho * wo) * itemsize \
        + (l_op.size + rbd.size) * op_itemsize                         # operators DMAed once
    need = 2 * (h * gp * w + tho * gp * wo) * itemsize \
        + (l_op.size + rbd.size) * op_itemsize

    out2 = pl.pallas_call(
        _lane_dense_kernel,
        out_shape=jax.ShapeDtypeStruct((ho, nc * wo), x.dtype),
        grid=(n_row, n_groups),
        in_specs=[
            pl.BlockSpec((h, gp * w), lambda r, p: (0, p)),
            pl.BlockSpec((tho, h), lambda r, p: (r, 0)),
            pl.BlockSpec((gp * w, gp * wo), lambda r, p: (0, 0)),
        ],
        out_specs=pl.BlockSpec((tho, gp * wo), lambda r, p: (r, p)),
        compiler_params=pltpu.CompilerParams(
            dimension_semantics=("parallel", "parallel"),
            vmem_limit_bytes=_vmem_limit(need, vmem_cap)),
        cost_estimate=pl.CostEstimate(flops=int(flops), transcendentals=0,
                                      bytes_accessed=int(bytes_accessed)),
    )(x2, l_op, rbd)

    return out2.reshape(ho, n, c, wo).transpose(1, 2, 0, 3)


def _run_row_stacked(x, l_h, r_np, op_dtype, num_cores, vmem_cap, vmem_budget, mxu_m):
    n, c, h, w = x.shape
    ho, wo = 2 * h, 2 * w
    nc = n * c
    itemsize = x.dtype.itemsize
    op_itemsize = jnp.dtype(op_dtype).itemsize

    kron_small = ho < mxu_m              # per-plane H-side dots would underfill MXU rows

    def use_kron_for(bp):
        return kron_small and bp * ho <= 1024

    def block_bytes(bp):
        l_elems = (bp * ho) * (bp * h) if use_kron_for(bp) else ho * h
        return 2 * bp * (h * w + ho * wo) * itemsize + (l_elems + w * wo) * op_itemsize

    def good_enough(bp):
        return bp * h >= mxu_m and bp * ho * wo * itemsize >= (1 << 20)

    bp = _pick_planes_per_step(nc, num_cores, vmem_budget, block_bytes, good_enough)
    use_kron = use_kron_for(bp)
    steps = nc // bp

    l_np = np.kron(np.eye(bp), l_h) if use_kron else l_h
    l_op = jnp.asarray(l_np, dtype=op_dtype)
    r_op = jnp.asarray(r_np, dtype=op_dtype)
    x2 = x.reshape(nc * h, w)                                          # free row-major reshape

    flops = 2 * nc * h * w * wo + 2 * steps * l_op.shape[0] * l_op.shape[1] * wo
    bytes_accessed = (x.size + nc * ho * wo) * itemsize \
        + (l_op.size + r_op.size) * op_itemsize

    out2 = pl.pallas_call(
        _make_row_stacked_kernel(bp, h, ho, use_kron),
        out_shape=jax.ShapeDtypeStruct((nc * ho, wo), x.dtype),
        grid=(steps,),
        in_specs=[
            pl.BlockSpec((bp * h, w), lambda i: (i, 0)),
            pl.BlockSpec(l_op.shape, lambda i: (0, 0)),
            pl.BlockSpec((w, wo), lambda i: (0, 0)),
        ],
        out_specs=pl.BlockSpec((bp * ho, wo), lambda i: (i, 0)),
        compiler_params=pltpu.CompilerParams(
            dimension_semantics=("parallel",),
            vmem_limit_bytes=_vmem_limit(block_bytes(bp), vmem_cap)),
        cost_estimate=pl.CostEstimate(flops=int(flops), transcendentals=0,
                                      bytes_accessed=int(bytes_accessed)),
    )(x2, l_op, r_op)

    return out2.reshape(n, c, ho, wo)


def _run_per_plane(x, l_h, r_np, op_dtype, num_cores, vmem_cap, vmem_budget):
    """Robust fallback (e.g. H % 8 != 0): 3-D blocks (bp, H, W) are always BlockSpec-legal
    and never build a kron(I, L) operator."""
    n, c, h, w = x.shape
    ho, wo = 2 * h, 2 * w
    nc = n * c
    itemsize = x.dtype.itemsize
    op_itemsize = jnp.dtype(op_dtype).itemsize
    op_b = (ho * h + w * wo) * op_itemsize

    def block_bytes(bp):
        return 2 * bp * (h * w + ho * wo) * itemsize + op_b

    def good_enough(bp):
        return bp * ho * wo * itemsize >= (1 << 20)

    bp = _pick_planes_per_step(nc, num_cores, vmem_budget, block_bytes, good_enough)
    steps = nc // bp

    l_op = jnp.asarray(l_h, dtype=op_dtype)
    r_op = jnp.asarray(r_np, dtype=op_dtype)
    x3 = x.reshape(nc, h, w)

    flops = 2 * nc * (h * w * wo + ho * h * wo)
    bytes_accessed = (x.size + nc * ho * wo) * itemsize + (l_op.size + r_op.size) * op_itemsize

    out3 = pl.pallas_call(
        _make_per_plane_kernel(bp),
        out_shape=jax.ShapeDtypeStruct((nc, ho, wo), x.dtype),
        grid=(steps,),
        in_specs=[
            pl.BlockSpec((bp, h, w), lambda i: (i, 0, 0)),
            pl.BlockSpec((ho, h), lambda i: (0, 0)),
            pl.BlockSpec((w, wo), lambda i: (0, 0)),
        ],
        out_specs=pl.BlockSpec((bp, ho, wo), lambda i: (i, 0, 0)),
        compiler_params=pltpu.CompilerParams(
            dimension_semantics=("parallel",),
            vmem_limit_bytes=_vmem_limit(block_bytes(bp), vmem_cap)),
        cost_estimate=pl.CostEstimate(flops=int(flops), transcendentals=0,
                                      bytes_accessed=int(bytes_accessed)),
    )(x3, l_op, r_op)

    return out3.reshape(n, c, ho, wo)


# ---------------------------------------------------------------------------
# Public entry point.
# ---------------------------------------------------------------------------
def upsample(x: jax.Array) -> jax.Array:
    """Equivalent of Upsample.forward (bilinear x2 then binomial smooth) on NCHW input."""
    n, c, h, w = x.shape
    ho, wo = 2 * h, 2 * w
    nc = n * c

    num_cores, vmem_cap, mxu_m = _tpu_params()
    vmem_budget = max(8 * 1024 * 1024, vmem_cap // 3)

    op_dtype = jnp.bfloat16 if x.dtype == jnp.bfloat16 else jnp.float32
    itemsize = x.dtype.itemsize
    op_itemsize = jnp.dtype(op_dtype).itemsize

    # Fixed "parameters": smoothing folded with the bilinear x2 upsample, per axis.
    l_h = _smooth_matrix(ho) @ _upsample_matrix(h)        # (Ho, H)
    l_w = _smooth_matrix(wo) @ _upsample_matrix(w)        # (Wo, W)
    r_np = np.ascontiguousarray(l_w.T)                    # (W, Wo)

    if wo < 128:
        plan = _plan_lane_dense(nc, h, w, itemsize, op_itemsize, num_cores, vmem_budget)
        if plan is not None:
            return _run_lane_dense(x, l_h, r_np, op_dtype, plan, vmem_cap)
    if h % 8 == 0:
        return _run_row_stacked(x, l_h, r_np, op_dtype, num_cores, vmem_cap,
                                vmem_budget, mxu_m)
    return _run_per_plane(x, l_h, r_np, op_dtype, num_cores, vmem_cap, vmem_budget)


# ---------------------------------------------------------------------------
# Pure-JAX reference for validation.
# ---------------------------------------------------------------------------
def _reference(x: jax.Array) -> jax.Array:
    # TODO(synk): SmoothingFunction.forward is not defined in the provided source; assumed
    # standard ReplicationPad2d(1) + depthwise 3x3 [[1,2,1],[2,4,2],[1,2,1]]/16 conv.
    n, c, h, w = x.shape

    def up_axis(a, size, axis):
        out = 2 * size
        i = np.arange(out, dtype=np.float64)
        s = np.maximum((i + 0.5) * 0.5 - 0.5, 0.0)
        i0 = np.minimum(np.floor(s).astype(np.int32), size - 1)
        i1 = np.minimum(i0 + 1, size - 1)
        lam = (s - i0).astype(np.float32)
        a0 = jnp.take(a, jnp.asarray(i0), axis=axis)
        a1 = jnp.take(a, jnp.asarray(i1), axis=axis)
        shape = [1] * a.ndim
        shape[axis] = out
        lam = jnp.asarray(lam).reshape(shape)
        return a0 * (1.0 - lam) + a1 * lam

    up = up_axis(up_axis(x, h, 2), w, 3)                  # bilinear x2, align_corners=False
    hp, wp = 2 * h, 2 * w
    k = np.array([[1.0, 2.0, 1.0], [2.0, 4.0, 2.0], [1.0, 2.0, 1.0]], np.float32) / 16.0
    xp = jnp.pad(up, ((0, 0), (0, 0), (1, 1), (1, 1)), mode="edge")
    s = jnp.zeros_like(up)
    for dy in range(3):
        for dx in range(3):
            s = s + k[dy, dx] * xp[:, :, dy:dy + hp, dx:dx + wp]
    return s


if __name__ == "__main__":
    key = jax.random.PRNGKey(0)
    x = jax.random.normal(key, (2, 4, 16, 16), dtype=jnp.float32)  # NCHW like PyTorch

    y = jax.block_until_ready(upsample(x))
    assert y.shape == (2, 4, 32, 32), y.shape

    y_ref = _reference(x)
    np.testing.assert_allclose(np.asarray(y), np.asarray(y_ref), rtol=1e-4, atol=1e-4)

    print("KERNEL_OK")
</pallas_src>

<mosaic_0001>
module attributes {stable_mosaic.version = 11 : i64} {
  func.func @_lane_dense_kernel(%arg0: i32, %arg1: i32, %arg2: memref<16x128xf32, #tpu.memory_space<vmem>>, %arg3: memref<32x16xf32, #tpu.memory_space<vmem>>, %arg4: memref<128x256xf32, #tpu.memory_space<vmem>>, %arg5: memref<32x256xf32, #tpu.memory_space<vmem>>) attributes {dimension_semantics = [#tpu.dimension_semantics<parallel>, #tpu.dimension_semantics<parallel>], iteration_bounds = array<i64: 1, 1>, scalar_prefetch = 0 : i64, scratch_operands = 0 : i64, tpu.core_type = #tpu.core_type<tc>, window_params = [{transform_indices = @transform_0, window_bounds = array<i64: 16, 128>}, {transform_indices = @transform_1, window_bounds = array<i64: 32, 16>}, {pipeline_mode = #tpu.pipeline_mode<synchronous>, transform_indices = @transform_2, window_bounds = array<i64: 128, 256>}, {transform_indices = @transform_3, window_bounds = array<i64: 32, 256>}]} {
    %c0 = arith.constant 0 : index
    %c0_0 = arith.constant 0 : index
    %0 = vector.load %arg3[%c0, %c0_0] : memref<32x16xf32, #tpu.memory_space<vmem>>, vector<32x16xf32>
    %c0_1 = arith.constant 0 : index
    %c0_2 = arith.constant 0 : index
    %1 = vector.load %arg2[%c0_1, %c0_2] : memref<16x128xf32, #tpu.memory_space<vmem>>, vector<16x128xf32>
    %cst = arith.constant dense<0.000000e+00> : vector<32x128xf32>
    %2 = tpu.matmul %0, %1, %cst {dimension_numbers = #tpu.dot_dimension_numbers<[1], [0], [0], [1], [0, 0, 1, 1], [], []>} : vector<32x16xf32>, vector<16x128xf32>, vector<32x128xf32> -> vector<32x128xf32>
    %c0_3 = arith.constant 0 : index
    %c0_4 = arith.constant 0 : index
    %3 = vector.load %arg4[%c0_3, %c0_4] : memref<128x256xf32, #tpu.memory_space<vmem>>, vector<128x256xf32>
    %cst_5 = arith.constant dense<0.000000e+00> : vector<32x256xf32>
    %4 = tpu.matmul %2, %3, %cst_5 {dimension_numbers = #tpu.dot_dimension_numbers<[1], [0], [0], [1], [0, 0, 1, 1], [], []>} : vector<32x128xf32>, vector<128x256xf32>, vector<32x256xf32> -> vector<32x256xf32>
    %c0_6 = arith.constant 0 : index
    %c0_7 = arith.constant 0 : index
    %5 = vector.load %arg5[%c0_6, %c0_7] : memref<32x256xf32, #tpu.memory_space<vmem>>, vector<32x256xf32>
    tpu.vector_store %arg5[%c0_6, %c0_7], %4 {strides = array<i32>} : memref<32x256xf32, #tpu.memory_space<vmem>>, vector<32x256xf32>,
    return
  }
  func.func @transform_0(%arg0: i32, %arg1: i32) -> (i32, i32) {
    %c0_i32 = arith.constant 0 : i32
    %c0_i32_0 = arith.constant 0 : i32
    return %c0_i32, %arg1 : i32, i32
  }
  func.func @transform_1(%arg0: i32, %arg1: i32) -> (i32, i32) {
    %c0_i32 = arith.constant 0 : i32
    %c0_i32_0 = arith.constant 0 : i32
    return %arg0, %c0_i32 : i32, i32
  }
  func.func @transform_2(%arg0: i32, %arg1: i32) -> (i32, i32) {
    %c0_i32 = arith.constant 0 : i32
    %c0_i32_0 = arith.constant 0 : i32
    %c0_i32_1 = arith.constant 0 : i32
    return %c0_i32, %c0_i32_0 : i32, i32
  }
  func.func @transform_3(%arg0: i32, %arg1: i32) -> (i32, i32) {
    %c0_i32 = arith.constant 0 : i32
    return %arg0, %arg1 : i32, i32
  }
}

</mosaic_0001>

<llo_original>
// kernel: tpu_custom_call.1
$region0: #{tpu_custom_call.1}
  #allocation0 [shape = 'u32[]', space=smem, size = 0x4, offset = 0x4, fixed_abs, tag = 'smem constant byte address 0x4 - core index']
  #allocation1 [shape = 'u32[72,128]{1,0:T(1,128)}', space=vmem, size = 0x9000, scoped, tag = 'internal scratch']
  %s0 = inlined_call_operand.vmem [shape: f32[16,128], index: 0, kind: input, shape index: {}]
  %s1 = inlined_call_operand.vmem [shape: f32[32,16], index: 1, kind: input, shape index: {}]
  %s2 = inlined_call_operand.hbm [shape: f32[128,256], index: 2, kind: input, shape index: {}]
  %s3 = inlined_call_operand.hbm [shape: f32[32,256], index: 3, kind: output, shape index: {}]
  %s4 = sld [smem:[#allocation0]]
  $region26: #{tpu_custom_call.1} parent=0
    _
  %s6 = ssub.s32 1, %s4
  %s7 = scalar_select 0, %s6, %s4
  $region1: #{tpu_custom_call.1} parent=0
    #allocation2 [shape = 'u8[131072]{0}', space=vmem, size = 0x20000, scoped, tag = 'input window, operand 2, single buffered']
    #allocation3 [shape = 's32[1]{0}', space=sflag, size = 0x4, scoped, tag = 'scoped memory for tpu_custom_call.1']
    #allocation4 [shape = 's32[1]{0}', space=sflag, size = 0x4, scoped, tag = 'scoped memory for tpu_custom_call.1']
    #allocation5 [shape = 'u8[32768]{0}', space=vmem, size = 0x8000, scoped, tag = 'output window, operand 0, single buffered']
    %8 = vsyncpa [#allocation3], 0
    %9 = vsyncpa [#allocation4], 0
    // Predicated region
    $region2: #{tpu_custom_call.1} parent=1 // pred_check
      _
    $region3: #{tpu_custom_call.1} parent=1 // pred_check_branch
      %11 = sbr.rel (0) target = $region5
    $region4: #{tpu_custom_call.1} parent=1 // pred_region
      _
    $region5: #{tpu_custom_call.1} parent=1 // pred_fallthru
      _
    // Predicated region
    $region6: #{tpu_custom_call.1} parent=1 // pred_check
      _
    $region7: #{tpu_custom_call.1} parent=1 // pred_check_branch
      %13 = sbr.rel (0) target = $region9
    $region8: #{tpu_custom_call.1} parent=1 // pred_region
      _
    $region9: #{tpu_custom_call.1} parent=1 // pred_fallthru
      _
    // Predicated region
    $region10: #{tpu_custom_call.1} parent=1 // pred_check
      _
    $region11: #{tpu_custom_call.1} parent=1 // pred_check_branch
      %15 = sbr.rel (0) target = $region13
    $region12: #{tpu_custom_call.1} parent=1 // pred_region
      %17 = vsyncadd [#allocation3], 0
      %s18 = sshll.u32 %s2, 4
      %s19 = int_to_ptr.hbm [resolvable:$true] %s18
      %s20 = sshll.u32 [#allocation2], 4
      %s21 = int_to_ptr.vmem [resolvable:$true] %s20
      %26 = dma.hbm_to_vmem [thread:$0]  %s19, 4096, %s21, [#allocation3], 256, 256, 16
    $region13: #{tpu_custom_call.1} parent=1 // pred_fallthru
      _
    // Predicated region
    $region14: #{tpu_custom_call.1} parent=1 // pred_check
      _
    $region15: #{tpu_custom_call.1} parent=1 // pred_check_branch
      %28 = sbr.rel (0) target = $region17
    $region16: #{tpu_custom_call.1} parent=1 // pred_region
      %30 = dma.done [#allocation3], 4096
    $region17: #{tpu_custom_call.1} parent=1 // pred_fallthru
      _
    %v31 = vld [vmem:[%s1] sm:$0xff]
    %v32 = vld [vmem:[%s1 + $0x8] sm:$0xff]
    %v33 = vld [vmem:[%s1 + $0x10] sm:$0xff]
    %v34 = vld [vmem:[%s1 + $0x18] sm:$0xff]
    %v35 = vld [vmem:[%s0] sm:$0xff]
    %v36 = vld [vmem:[%s0 + $0x8] sm:$0xff]
    %vm37 = vcmask 130048
    %v39 = vsel %vm37, %v31, 0
    %v42 = vsel %vm37, %v32, 0
    %v45 = vsel %vm37, %v33, 0
    %v48 = vsel %vm37, %v34, 0
    %50 = vmatpush.msra.mxu0 0.0
    %51 = vmatpush.msra.mxu0 0.0
    %52 = vmatpush.msra.mxu0 0.0
    %53 = vmatpush.msra.mxu0 0.0
    %54 = vmatpush.msra.mxu0 0.0
    %55 = vmatpush.msra.mxu0 0.0
    %56 = vmatpush.msra.mxu0 0.0
    %57 = vmatpush.msra.mxu0 0.0
    %58 = vmatpush.msra.mxu0 0.0
    %59 = vmatpush.msra.mxu0 0.0
    %60 = vmatpush.msra.mxu0 0.0
    %61 = vmatpush.msra.mxu0 0.0
    %62 = vmatpush.msra.mxu0 0.0
    %63 = vmatpush.msra.mxu0 0.0
    %64 = vmatpush.msra.mxu0 %v36
    %65 = vmatpush.msra.mxu0 %v35
    %66 = vmatmul.f32.gmra.mxu0 %v39
    %v67 = vpop.f32.mrf.mxu0
    %v68 = vadd.f32 0.0, %v67
    %69 = vmatmul.f32.gmra.mxu0 %v42
    %v70 = vpop.f32.mrf.mxu0
    %v71 = vadd.f32 0.0, %v70
    %72 = vmatmul.f32.gmra.mxu0 %v45
    %v73 = vpop.f32.mrf.mxu0
    %v74 = vadd.f32 0.0, %v73
    %75 = vmatmul.f32.gmra.mxu0 %v48
    %v76 = vpop.f32.mrf.mxu0
    %v77 = vadd.f32 0.0, %v76
    %78 = vdwg.mxu0
    %v79 = vld [vmem:[#allocation2] sm:$0xff]
    %v80 = vld [vmem:[#allocation2 + $0x8] sm:$0xff]
    %v81 = vld [vmem:[#allocation2 + $0x10] sm:$0xff]
    %v82 = vld [vmem:[#allocation2 + $0x18] sm:$0xff]
    %v83 = vld [vmem:[#allocation2 + $0x20] sm:$0xff]
    %v84 = vld [vmem:[#allocation2 + $0x28] sm:$0xff]
    %v85 = vld [vmem:[#allocation2 + $0x30] sm:$0xff]
    %v86 = vld [vmem:[#allocation2 + $0x38] sm:$0xff]
    %v87 = vld [vmem:[#allocation2 + $0x40] sm:$0xff]
    %v88 = vld [vmem:[#allocation2 + $0x48] sm:$0xff]
    %v89 = vld [vmem:[#allocation2 + $0x50] sm:$0xff]
    %v90 = vld [vmem:[#allocation2 + $0x58] sm:$0xff]
    %v91 = vld [vmem:[#allocation2 + $0x60] sm:$0xff]
    %v92 = vld [vmem:[#allocation2 + $0x68] sm:$0xff]
    %v93 = vld [vmem:[#allocation2 + $0x70] sm:$0xff]
    %v94 = vld [vmem:[#allocation2 + $0x78] sm:$0xff]
    %v95 = vld [vmem:[#allocation2 + $0x80] sm:$0xff]
    %v96 = vld [vmem:[#allocation2 + $0x88] sm:$0xff]
    %v97 = vld [vmem:[#allocation2 + $0x90] sm:$0xff]
    %v98 = vld [vmem:[#allocation2 + $0x98] sm:$0xff]
    %v99 = vld [vmem:[#allocation2 + $0xa0] sm:$0xff]
    %v100 = vld [vmem:[#allocation2 + $0xa8] sm:$0xff]
    %v101 = vld [vmem:[#allocation2 + $0xb0] sm:$0xff]
    %v102 = vld [vmem:[#allocation2 + $0xb8] sm:$0xff]
    %v103 = vld [vmem:[#allocation2 + $0xc0] sm:$0xff]
    %v104 = vld [vmem:[#allocation2 + $0xc8] sm:$0xff]
    %v105 = vld [vmem:[#allocation2 + $0xd0] sm:$0xff]
    %v106 = vld [vmem:[#allocation2 + $0xd8] sm:$0xff]
    %v107 = vld [vmem:[#allocation2 + $0xe0] sm:$0xff]
    %v108 = vld [vmem:[#allocation2 + $0xe8] sm:$0xff]
    %v109 = vld [vmem:[#allocation2 + $0xf0] sm:$0xff]
    %v110 = vld [vmem:[#allocation2 + $0xf8] sm:$0xff]
    %111 = vmatpush.msra.mxu0 %v109
    %112 = vmatpush.msra.mxu0 %v107
    %113 = vmatpush.msra.mxu0 %v105
    %114 = vmatpush.msra.mxu0 %v103
    %115 = vmatpush.msra.mxu0 %v101
    %116 = vmatpush.msra.mxu0 %v99
    %117 = vmatpush.msra.mxu0 %v97
    %118 = vmatpush.msra.mxu0 %v95
    %119 = vmatpush.msra.mxu0 %v93
    %120 = vmatpush.msra.mxu0 %v91
    %121 = vmatpush.msra.mxu0 %v89
    %122 = vmatpush.msra.mxu0 %v87
    %123 = vmatpush.msra.mxu0 %v85
    %124 = vmatpush.msra.mxu0 %v83
    %125 = vmatpush.msra.mxu0 %v81
    %126 = vmatpush.msra.mxu0 %v79
    %127 = vmatmul.f32.gmra.mxu0 %v68
    %v128 = vpop.f32.mrf.mxu0
    %v129 = vadd.f32 0.0, %v128
    %130 = vmatmul.f32.gmra.mxu0 %v71
    %v131 = vpop.f32.mrf.mxu0
    %v132 = vadd.f32 0.0, %v131
    %133 = vmatmul.f32.gmra.mxu0 %v74
    %v134 = vpop.f32.mrf.mxu0
    %v135 = vadd.f32 0.0, %v134
    %136 = vmatmul.f32.gmra.mxu0 %v77
    %v137 = vpop.f32.mrf.mxu0
    %v138 = vadd.f32 0.0, %v137
    %139 = vdwg.mxu0
    %140 = vmatpush.msra.mxu0 %v110
    %141 = vmatpush.msra.mxu0 %v108
    %142 = vmatpush.msra.mxu0 %v106
    %143 = vmatpush.msra.mxu0 %v104
    %144 = vmatpush.msra.mxu0 %v102
    %145 = vmatpush.msra.mxu0 %v100
    %146 = vmatpush.msra.mxu0 %v98
    %147 = vmatpush.msra.mxu0 %v96
    %148 = vmatpush.msra.mxu0 %v94
    %149 = vmatpush.msra.mxu0 %v92
    %150 = vmatpush.msra.mxu0 %v90
    %151 = vmatpush.msra.mxu0 %v88
    %152 = vmatpush.msra.mxu0 %v86
    %153 = vmatpush.msra.mxu0 %v84
    %154 = vmatpush.msra.mxu0 %v82
    %155 = vmatpush.msra.mxu0 %v80
    %156 = vmatmul.f32.gmra.mxu0 %v68
    %v157 = vpop.f32.mrf.mxu0
    %v158 = vadd.f32 0.0, %v157
    %159 = vmatmul.f32.gmra.mxu0 %v71
    %v160 = vpop.f32.mrf.mxu0
    %v161 = vadd.f32 0.0, %v160
    %162 = vmatmul.f32.gmra.mxu0 %v74
    %v163 = vpop.f32.mrf.mxu0
    %v164 = vadd.f32 0.0, %v163
    %165 = vmatmul.f32.gmra.mxu0 %v77
    %v166 = vpop.f32.mrf.mxu0
    %v167 = vadd.f32 0.0, %v166
    %168 = vdwg.mxu0
    %169 = vst [vmem:[#allocation5] sm:$0xff] %v129
    %170 = vst [vmem:[#allocation5 + $0x8] sm:$0xff] %v158
    %171 = vst [vmem:[#allocation5 + $0x10] sm:$0xff] %v132
    %172 = vst [vmem:[#allocation5 + $0x18] sm:$0xff] %v161
    %173 = vst [vmem:[#allocation5 + $0x20] sm:$0xff] %v135
    %174 = vst [vmem:[#allocation5 + $0x28] sm:$0xff] %v164
    %175 = vst [vmem:[#allocation5 + $0x30] sm:$0xff] %v138
    %176 = vst [vmem:[#allocation5 + $0x38] sm:$0xff] %v167
    // Predicated region
    $region18: #{tpu_custom_call.1} parent=1 // pred_check
      _
    $region19: #{tpu_custom_call.1} parent=1 // pred_check_branch
      %178 = sbr.rel (0) target = $region21
    $region20: #{tpu_custom_call.1} parent=1 // pred_region
      %180 = vsyncadd [#allocation4], 0
      %s181 = sshll.u32 [#allocation5], 4
      %s182 = int_to_ptr.vmem [resolvable:$true] %s181
      %s183 = sshll.u32 %s3, 4
      %s184 = int_to_ptr.hbm [resolvable:$true] %s183
      %189 = dma.vmem_to_hbm [thread:$0]  %s182, 1024, %s184, [#allocation4], 256, 256, 16
    $region21: #{tpu_custom_call.1} parent=1 // pred_fallthru
      _
    // Predicated region
    $region22: #{tpu_custom_call.1} parent=1 // pred_check
      _
    $region23: #{tpu_custom_call.1} parent=1 // pred_check_branch
      %191 = sbr.rel (0) target = $region25
    $region24: #{tpu_custom_call.1} parent=1 // pred_region
      %193 = dma.done [#allocation4], 1024
    $region25: #{tpu_custom_call.1} parent=1 // pred_fallthru
      _
    %194 = vsyncpa [#allocation3], 1
    %195 = vsyncpa [#allocation4], 1

</llo_original>
